<compile_context>
chip_gen: v7x
topology: tpu7x:2x2x1
jax: 0.10.0
libtpu: 0.0.40
codegen_flags: <defaults>
</compile_context>

<pallas_src>
import functools
import math

import numpy as np
import jax
import jax.numpy as jnp
from jax.experimental import pallas as pl
from jax.experimental.pallas import tpu as pltpu

SCALES_MIN = 0.11          # GaussianConditional scale lower bound
LIKELIHOOD_MIN = 1e-9      # likelihood lower bound
WINDOW_SIZE = 8

# Small synthetic configuration (module defaults are N=192, M=320).
N_CH = 32                  # must be divisible by max(num_heads)=16
M_CH = 40                  # must be divisible by slice_num=10
DEPTHS = [1, 2, 3, 1, 1]
NUM_HEADS = [4, 8, 16, 16, 16]

_INV_SQRT2 = 1.0 / math.sqrt(2.0)


def _round_up(x, m):
    return ((x + m - 1) // m) * m


def _erf(x):
    # Abramowitz & Stegun 7.1.26 (|err| < 1.5e-7); exp/mul/add only, so it
    # lowers cleanly inside Pallas kernels.
    a1, a2, a3, a4, a5 = 0.254829592, -0.284496736, 1.421413741, -1.453152027, 1.061405429
    p = 0.3275911
    sgn = jnp.sign(x)
    ax = jnp.abs(x)
    t = 1.0 / (1.0 + p * ax)
    poly = ((((a5 * t + a4) * t + a3) * t + a2) * t + a1) * t
    return sgn * (1.0 - poly * jnp.exp(-ax * ax))


# ----------------------------------------------------------------------------
# Pallas kernels
# ----------------------------------------------------------------------------


def _matmul_kernel(a_ref, w_ref, bias_ref, o_ref, *, act):
    # Full-K block matmul: bf16 MXU inputs, f32 accumulation, fused
    # bias + activation epilogue.
    a = a_ref[...].astype(jnp.bfloat16)
    acc = jnp.dot(a, w_ref[...], preferred_element_type=jnp.float32)
    acc = acc + bias_ref[...]
    if act == "gelu":                       # exact (erf) GELU
        acc = 0.5 * acc * (1.0 + _erf(acc * _INV_SQRT2))
    elif act == "leaky_relu":               # PyTorch default slope 0.01
        acc = jnp.where(acc >= 0.0, acc, 0.01 * acc)
    o_ref[...] = acc.astype(o_ref.dtype)


def pallas_matmul(a, w, bias=None, act=None, tm=256, tn=128):
    """(M,K)@(K,N)+bias (+fused activation) via a Pallas MXU kernel.

    * activations are NOT padded/sliced (K = one full block, row edge blocks
      masked, output written at its exact shape); only the small weight /
      bias are padded to a 128-lane multiple and cast to bf16 here.
    """
    M, K = a.shape
    _, N = w.shape
    if bias is None:
        bias = jnp.zeros((N,), jnp.float32)

    # Tiny row pad (multiple of 32 covers f32/bf16/int8 sublane packing).
    Mp = _round_up(M, 32)
    a_p = a if Mp == M else jnp.pad(a, ((0, Mp - M), (0, 0)))
    Np = _round_up(N, tn)
    w_p = jnp.pad(w.astype(jnp.bfloat16), ((0, 0), (0, Np - N)))
    bias_p = jnp.pad(bias.astype(jnp.float32), (0, Np - N)).reshape(1, Np)

    tm_eff = min(tm, Mp)
    grid = (pl.cdiv(Mp, tm_eff), Np // tn)

    return pl.pallas_call(
        functools.partial(_matmul_kernel, act=act),
        out_shape=jax.ShapeDtypeStruct((M, N), jnp.float32),
        grid=grid,
        in_specs=[pl.BlockSpec((tm_eff, K), lambda i, j: (i, 0)),
                  pl.BlockSpec((K, tn), lambda i, j: (0, j)),
                  pl.BlockSpec((1, tn), lambda i, j: (0, j))],
        out_specs=pl.BlockSpec((tm_eff, tn), lambda i, j: (i, j)),
        compiler_params=pltpu.CompilerParams(
            dimension_semantics=("parallel", "parallel")),
    )(a_p, w_p, bias_p)


def _attn_kernel(qkv_ref, rbias_ref, mask_ref, o_ref, *, num_heads, head_dim, scale):
    # One window per grid step, all heads processed -> lane-dense (1,T,C) out.
    C = num_heads * head_dim
    qkv = qkv_ref[0]                                   # (T, 3C) f32
    m = mask_ref[0]                                    # (T, T)  f32
    for h in range(num_heads):
        lo = h * head_dim
        q = qkv[:, lo:lo + head_dim].astype(jnp.bfloat16)
        k = qkv[:, C + lo:C + lo + head_dim].astype(jnp.bfloat16)
        v = qkv[:, 2 * C + lo:2 * C + lo + head_dim].astype(jnp.bfloat16)
        # contract over head_dim directly (no host-side k transpose)
        s = jax.lax.dot_general(q, k, (((1,), (1,)), ((), ())),
                                preferred_element_type=jnp.float32)
        s = s * scale + rbias_ref[h] + m
        s = s - jnp.max(s, axis=-1, keepdims=True)
        p = jnp.exp(s)
        p = p / jnp.sum(p, axis=-1, keepdims=True)
        o = jnp.dot(p.astype(jnp.bfloat16), v, preferred_element_type=jnp.float32)
        o_ref[0, :, lo:lo + head_dim] = o


def pallas_window_attention(qkv, rel_bias, mask, *, num_heads, head_dim, scale,
                            n_win_per_img):
    """qkv: (nWB, T, 3C) in post-linear layout; rel_bias: (nH, T, T);
    mask: (nW, T, T) (or (1,T,T) zeros when un-shifted)."""
    nWB, T, C3 = qkv.shape
    C = num_heads * head_dim
    if mask.shape[0] == 1:
        mask_map = lambda g: (0, 0, 0)
    else:
        mask_map = lambda g: (g % n_win_per_img, 0, 0)
    return pl.pallas_call(
        functools.partial(_attn_kernel, num_heads=num_heads,
                          head_dim=head_dim, scale=scale),
        out_shape=jax.ShapeDtypeStruct((nWB, T, C), jnp.float32),
        grid=(nWB,),
        in_specs=[pl.BlockSpec((1, T, C3), lambda g: (g, 0, 0)),
                  pl.BlockSpec((num_heads, T, T), lambda g: (0, 0, 0)),
                  pl.BlockSpec((1, T, T), mask_map)],
        out_specs=pl.BlockSpec((1, T, C), lambda g: (g, 0, 0)),
        compiler_params=pltpu.CompilerParams(
            dimension_semantics=("parallel",)),
    )(qkv.astype(jnp.float32), rel_bias.astype(jnp.float32),
      mask.astype(jnp.float32))


def _gc_likelihood_kernel(y_ref, s_ref, m_ref, l_ref):
    y = y_ref[...]
    m = m_ref[...]
    scales = jnp.maximum(s_ref[...], SCALES_MIN)          # LowerBound(0.11)
    y_hat = jnp.round(y - m) + m                          # eval-mode "dequantize"
    v = jnp.abs(y_hat - m)
    inv = _INV_SQRT2 / scales
    upper = 0.5 * (1.0 + _erf((0.5 - v) * inv))
    lower = 0.5 * (1.0 + _erf((-0.5 - v) * inv))
    l_ref[...] = jnp.maximum(upper - lower, LIKELIHOOD_MIN)


def gaussian_likelihoods(y, scales, means, tr=512):
    """Single row-tiled elementwise kernel over the full latent tensor."""
    shp = y.shape
    C = shp[-1]
    R = int(np.prod(shp[:-1]))
    tr_eff = min(tr, _round_up(R, 8))

    def f(t):
        return t.reshape(R, C).astype(jnp.float32)

    out = pl.pallas_call(
        _gc_likelihood_kernel,
        out_shape=jax.ShapeDtypeStruct((R, C), jnp.float32),
        grid=(pl.cdiv(R, tr_eff),),
        in_specs=[pl.BlockSpec((tr_eff, C), lambda i: (i, 0))] * 3,
        out_specs=pl.BlockSpec((tr_eff, C), lambda i: (i, 0)),
        compiler_params=pltpu.CompilerParams(
            dimension_semantics=("parallel",)),
    )(f(y), f(scales), f(means))
    return out.reshape(shp)


# ----------------------------------------------------------------------------
# Conv / deconv / misc layers (im2col glue -> Pallas matmul)
# ----------------------------------------------------------------------------


def _im2col(x, kh, kw, stride, pad):
    if pad > 0:
        x = jnp.pad(x, ((0, 0), (pad, pad), (pad, pad), (0, 0)))
    B, H, W, C = x.shape
    oh = (H - kh) // stride + 1
    ow = (W - kw) // stride + 1
    cols = []
    for i in range(kh):
        for j in range(kw):
            cols.append(x[:, i:i + stride * oh:stride, j:j + stride * ow:stride, :])
    return jnp.concatenate(cols, axis=-1), oh, ow


def conv2d(x, w, b, stride=1, padding=None, act=None):
    # w: PyTorch Conv2d layout (cout, cin, kh, kw).  Patches built in bf16.
    cout, cin, kh, kw = w.shape
    if padding is None:
        padding = kh // 2
    patches, oh, ow = _im2col(x.astype(jnp.bfloat16), kh, kw, stride, padding)
    wmat = jnp.transpose(w, (2, 3, 1, 0)).reshape(kh * kw * cin, cout)
    out = pallas_matmul(patches.reshape(-1, kh * kw * cin), wmat, b, act=act)
    return out.reshape(x.shape[0], oh, ow, cout)


def deconv2d(x, w, b, stride=2, act=None):
    """ConvTranspose2d(k=3, s=2, p=1, output_padding=1) via sub-pixel
    decomposition: one matmul on 2x2 patches of the *un-dilated* input, four
    output phases interleaved afterwards (no zero-dilated intermediate)."""
    cin, cout, kh, kw = w.shape
    assert stride == 2 and kh == 3 and kw == 3
    B, H, W, C = x.shape
    xp = jnp.pad(x.astype(jnp.bfloat16), ((0, 0), (0, 1), (0, 1), (0, 0)))
    patches, oh, ow = _im2col(xp, 2, 2, 1, 0)          # taps (0,0),(0,1),(1,0),(1,1)
    assert (oh, ow) == (H, W)

    def wk(a, c):
        return w[:, :, a, c]                            # (cin, cout)

    z = jnp.zeros((cin, cout), w.dtype)
    # columns per phase: [even-even | even-odd | odd-even | odd-odd]
    row00 = jnp.concatenate([wk(1, 1), wk(1, 2), wk(2, 1), wk(2, 2)], axis=1)
    row01 = jnp.concatenate([z,        wk(1, 0), z,        wk(2, 0)], axis=1)
    row10 = jnp.concatenate([z,        z,        wk(0, 1), wk(0, 2)], axis=1)
    row11 = jnp.concatenate([z,        z,        z,        wk(0, 0)], axis=1)
    wmat = jnp.concatenate([row00, row01, row10, row11], axis=0)   # (4cin, 4cout)
    bias4 = jnp.tile(b, 4)

    out = pallas_matmul(patches.reshape(-1, 4 * cin), wmat, bias4, act=act)
    out = out.reshape(B, H, W, 2, 2, cout)              # (..., a, b, cout)
    out = out.transpose(0, 1, 3, 2, 4, 5).reshape(B, 2 * H, 2 * W, cout)
    return out


def pixel_shuffle(x, r):
    B, H, W, Crr = x.shape
    C = Crr // (r * r)
    x = x.reshape(B, H, W, C, r, r)
    x = x.transpose(0, 1, 4, 2, 5, 3)
    return x.reshape(B, H * r, W * r, C)


def layer_norm(x, gamma, beta, eps=1e-5):
    mu = jnp.mean(x, axis=-1, keepdims=True)
    var = jnp.mean((x - mu) ** 2, axis=-1, keepdims=True)
    return (x - mu) / jnp.sqrt(var + eps) * gamma + beta


def mlp1x1(layers, x):
    """Stack of 1x1 convs (per-pixel linear layers) with fused GELU in between."""
    B, H, W, C = x.shape
    h = x.reshape(-1, C)
    n = len(layers)
    for li, (w, b) in enumerate(layers):
        h = pallas_matmul(h, w, b, act="gelu" if li < n - 1 else None)
    return h.reshape(B, H, W, -1)


def enh(x, rev=False):
    # TODO(synk): EnhModule source not provided; identity passthrough.
    return x


# ----------------------------------------------------------------------------
# Swin / RSTB
# ----------------------------------------------------------------------------


def _rel_pos_index(ws):
    coords = np.stack(np.meshgrid(np.arange(ws), np.arange(ws), indexing="ij"))
    cf = coords.reshape(2, -1)
    rel = (cf[:, :, None] - cf[:, None, :]).transpose(1, 2, 0).astype(np.int64)
    rel[:, :, 0] += ws - 1
    rel[:, :, 1] += ws - 1
    rel[:, :, 0] *= 2 * ws - 1
    return rel.sum(-1)


_RPI = _rel_pos_index(WINDOW_SIZE)


def _window_partition(x, ws):
    B, H, W, C = x.shape
    x = x.reshape(B, H // ws, ws, W // ws, ws, C)
    return x.transpose(0, 1, 3, 2, 4, 5).reshape(-1, ws * ws, C)


def _window_reverse(wins, ws, B, H, W):
    C = wins.shape[-1]
    x = wins.reshape(B, H // ws, W // ws, ws, ws, C)
    return x.transpose(0, 1, 3, 2, 4, 5).reshape(B, H, W, C)


def _shift_attn_mask(H, W, ws, shift):
    img = np.zeros((1, H, W, 1), np.float32)
    cnt = 0
    for hs in (slice(0, -ws), slice(-ws, -shift), slice(-shift, None)):
        for wsl in (slice(0, -ws), slice(-ws, -shift), slice(-shift, None)):
            img[:, hs, wsl, :] = cnt
            cnt += 1
    win = img.reshape(1, H // ws, ws, W // ws, ws, 1).transpose(0, 1, 3, 2, 4, 5)
    win = win.reshape(-1, ws * ws)
    diff = win[:, None, :] - win[:, :, None]
    return jnp.asarray(np.where(diff != 0, -100.0, 0.0).astype(np.float32))


def swin_block(p, x, x_size, num_heads, shift):
    ws = WINDOW_SIZE
    H, W = x_size
    B, L, C = x.shape
    hd = C // num_heads
    T = ws * ws
    nW = (H // ws) * (W // ws)

    shortcut = x
    h = layer_norm(x, *p['norm1']).reshape(B, H, W, C)
    if shift > 0:
        h = jnp.roll(h, (-shift, -shift), axis=(1, 2))
    wins = _window_partition(h, ws)                           # (nWB, T, C)
    nWB = wins.shape[0]

    qkv_w, qkv_b = p['qkv']
    qkv = pallas_matmul(wins.reshape(-1, C), qkv_w, qkv_b)    # (nWB*T, 3C)

    rel_bias = p['rpb'][_RPI.reshape(-1)].reshape(T, T, num_heads).transpose(2, 0, 1)
    if shift > 0:
        mask = _shift_attn_mask(H, W, ws, shift)              # (nW, T, T)
    else:
        mask = jnp.zeros((1, T, T), jnp.float32)

    attn = pallas_window_attention(
        qkv.reshape(nWB, T, 3 * C), rel_bias, mask,
        num_heads=num_heads, head_dim=hd, scale=hd ** -0.5,
        n_win_per_img=nW)                                     # (nWB, T, C)

    proj_w, proj_b = p['proj']
    out = pallas_matmul(attn.reshape(nWB * T, C), proj_w, proj_b)

    h = _window_reverse(out.reshape(nWB, T, C), ws, B, H, W)
    if shift > 0:
        h = jnp.roll(h, (shift, shift), axis=(1, 2))
    x = shortcut + h.reshape(B, L, C)

    h2 = layer_norm(x, *p['norm2']).reshape(-1, C)
    h2 = pallas_matmul(h2, *p['fc1'], act="gelu")             # fused GELU
    h2 = pallas_matmul(h2, *p['fc2'])
    return x + h2.reshape(B, L, C)


def rstb(blocks, x, x_size, num_heads):
    # TODO(synk): RSTB source not provided; SwinIR/TIC-style residual group of
    # Swin transformer blocks with an outer residual connection is used.
    B, H, W, C = x.shape
    assert (H, W) == tuple(x_size)
    h = x.reshape(B, H * W, C)
    for i, bp in enumerate(blocks):
        shift = 0 if i % 2 == 0 else WINDOW_SIZE // 2
        h = swin_block(bp, h, (H, W), num_heads, shift)
    return h.reshape(B, H, W, C) + x


# ----------------------------------------------------------------------------
# Hyper / entropy modules
# ----------------------------------------------------------------------------


def h_a(P, y):
    # TODO(synk): HyperAnalysis source not provided; conv3x3+LeakyReLU stack.
    h = conv2d(y, P['h_a0']['w'], P['h_a0']['b'], stride=1, act="leaky_relu")
    h = conv2d(h, P['h_a1']['w'], P['h_a1']['b'], stride=2, act="leaky_relu")
    h = conv2d(h, P['h_a2']['w'], P['h_a2']['b'], stride=2)
    return h


def h_s(P, z_hat):
    # TODO(synk): HyperSynthesis source not provided; deconv/conv stack -> 2*M channels.
    h = deconv2d(z_hat, P['h_s0']['w'], P['h_s0']['b'], stride=2, act="leaky_relu")
    h = deconv2d(h, P['h_s1']['w'], P['h_s1']['b'], stride=2, act="leaky_relu")
    h = conv2d(h, P['h_s2']['w'], P['h_s2']['b'], stride=1)
    return h


def _logits_cumulative(eb, x):
    logits = x
    nf = len(eb['matrices'])
    for i in range(nf):
        m = jax.nn.softplus(eb['matrices'][i])
        logits = jnp.einsum('cij,cjn->cin', m, logits) + eb['biases'][i]
        if i < nf - 1:
            f = jnp.tanh(eb['factors'][i])
            logits = logits + f * jnp.tanh(logits)
    return logits


def eb_likelihoods(eb, z):
    # Fully-factorized entropy bottleneck likelihood (eval mode). Plain-JAX glue:
    # z is tiny (1x1 spatial at these sizes).
    B, h, w, C = z.shape
    med = eb['quantiles'][:, :, 1:2]                          # (C,1,1)
    v = jnp.transpose(z, (3, 0, 1, 2)).reshape(C, 1, -1)
    out = jnp.round(v - med) + med
    lower = _logits_cumulative(eb, out - 0.5)
    upper = _logits_cumulative(eb, out + 0.5)
    sign = -jnp.sign(lower + upper)
    lik = jnp.abs(jax.nn.sigmoid(sign * upper) - jax.nn.sigmoid(sign * lower))
    lik = jnp.maximum(lik, LIKELIHOOD_MIN)
    return lik.reshape(C, B, h, w).transpose(1, 2, 3, 0)


def ckbd_masks(H, W, dtype=jnp.float32):
    hh = jnp.arange(H)[:, None]
    ww = jnp.arange(W)[None, :]
    anchor = (((hh + ww) % 2) == 1).astype(dtype)[None, :, :, None]
    return anchor, 1.0 - anchor


# ----------------------------------------------------------------------------
# Analysis / synthesis transforms
# ----------------------------------------------------------------------------


def g_a(P, x, x_size):
    x = enh(x)
    x = conv2d(x, P['g_a0']['w'], P['g_a0']['b'], stride=2)
    x = rstb(P['g_a1'], x, (x_size[0] // 2, x_size[1] // 2), NUM_HEADS[0])
    x = conv2d(x, P['g_a2']['w'], P['g_a2']['b'], stride=2)
    x = rstb(P['g_a3'], x, (x_size[0] // 4, x_size[1] // 4), NUM_HEADS[1])
    x = conv2d(x, P['g_a4']['w'], P['g_a4']['b'], stride=2)
    x = rstb(P['g_a5'], x, (x_size[0] // 8, x_size[1] // 8), NUM_HEADS[2])
    x = conv2d(x, P['g_a6']['w'], P['g_a6']['b'], stride=2)
    return x


def g_s(P, x, x_size):
    x = deconv2d(x, P['g_s0']['w'], P['g_s0']['b'], stride=2)
    x = rstb(P['g_s1'], x, (x_size[0] // 8, x_size[1] // 8), NUM_HEADS[2])
    x = deconv2d(x, P['g_s2']['w'], P['g_s2']['b'], stride=2)
    x = rstb(P['g_s3'], x, (x_size[0] // 4, x_size[1] // 4), NUM_HEADS[1])
    x = deconv2d(x, P['g_s4']['w'], P['g_s4']['b'], stride=2)
    x = rstb(P['g_s5'], x, (x_size[0] // 2, x_size[1] // 2), NUM_HEADS[0])
    x = conv2d(x, P['g_s6']['w'], P['g_s6']['b'], stride=1)
    x = pixel_shuffle(x, 2)
    x = enh(x, rev=True)
    return x


# ----------------------------------------------------------------------------
# Full forward
# ----------------------------------------------------------------------------


def s2lic_forward(P, x_nchw):
    x = jnp.transpose(x_nchw, (0, 2, 3, 1)).astype(jnp.float32)      # NHWC
    x_size = (x.shape[1], x.shape[2])

    y = g_a(P, x, x_size)                                            # (B, h, w, M)
    z = h_a(P, y)
    z_lik = eb_likelihoods(P['eb'], z)
    z_med = P['eb']['quantiles'][:, 0, 1]                            # (N,)
    z_hat = jnp.round(z - z_med) + z_med                             # ste_round fwd

    hyper = h_s(P, z_hat)                                            # (B, h, w, 2M)
    hyper_scales, hyper_means = jnp.split(hyper, 2, axis=-1)

    slice_num = 10
    y_slices = jnp.split(y, slice_num, axis=-1)
    _, hh, ww, _ = y.shape
    amask, nmask = ckbd_masks(hh, ww)

    y_hat_slices = []
    scales_list, means_list = [], []
    for idx, ys in enumerate(y_slices):
        slice_anchor = ys * amask          # ckbd_split
        slice_nonanchor = ys * nmask

        if idx == 0:
            ep_in = hyper
        else:
            ctx = jnp.concatenate(y_hat_slices, axis=-1)
            ac_ctx = mlp1x1(P['acctx'][idx], ctx)
            ag_ctx = mlp1x1(P['agctx'][idx], ctx)
            ep_in = jnp.concatenate([ac_ctx, ag_ctx, hyper], axis=-1)

        pa = mlp1x1(P['ep_anchor'][idx], ep_in)
        scales_a, means_a = jnp.split(pa, 2, axis=-1)
        scales_a = scales_a * amask                                  # ckbd_anchor
        means_a = means_a * amask
        slice_anchor = jnp.round(slice_anchor - means_a) + means_a   # ste_round fwd
        lrp_a = mlp1x1(P['lrp_anchor'][idx],
                       jnp.concatenate([hyper_means] + y_hat_slices + [slice_anchor],
                                       axis=-1))
        slice_anchor = slice_anchor + lrp_a * amask

        pn = mlp1x1(P['ep_nonanchor'][idx], ep_in)
        scales_n, means_n = jnp.split(pn, 2, axis=-1)
        scales_n = scales_n * nmask                                  # ckbd_nonanchor
        means_n = means_n * nmask
        scales_slice = scales_a + scales_n                           # ckbd_merge
        means_slice = means_a + means_n
        scales_list.append(scales_slice)
        means_list.append(means_slice)

        slice_nonanchor = jnp.round(slice_nonanchor - means_n) + means_n
        y_hat_slice = slice_anchor + slice_nonanchor
        lrp_n = mlp1x1(P['lrp_nonanchor'][idx],
                       jnp.concatenate([hyper_means] + y_hat_slices + [y_hat_slice],
                                       axis=-1))
        y_hat_slice = y_hat_slice + lrp_n * nmask

        y_hat_slices.append(y_hat_slice)

    # single lane-dense likelihood kernel over all slices at once
    y_lik = gaussian_likelihoods(y,
                                 jnp.concatenate(scales_list, axis=-1),
                                 jnp.concatenate(means_list, axis=-1))

    y_hat = jnp.concatenate(y_hat_slices, axis=-1)
    x_hat = g_s(P, y_hat, x_size)

    to_nchw = lambda t: jnp.transpose(t, (0, 3, 1, 2))
    return {'x_hat': to_nchw(x_hat),
            'likelihoods': {'y_likelihoods': to_nchw(y_lik),
                            'z_likelihoods': to_nchw(z_lik)}}


# ----------------------------------------------------------------------------
# Deterministic parameter initialization
# ----------------------------------------------------------------------------

_global_key = [jax.random.PRNGKey(42)]


def _next_key():
    _global_key[0], k = jax.random.split(_global_key[0])
    return k


def _uniform(shape, bound):
    return jax.random.uniform(_next_key(), shape, jnp.float32, -bound, bound)


def _init_conv(cin, cout, k):
    bound = 1.0 / math.sqrt(cin * k * k)
    return {'w': _uniform((cout, cin, k, k), bound), 'b': _uniform((cout,), bound)}


def _init_deconv(cin, cout, k):
    bound = 1.0 / math.sqrt(cout * k * k)
    return {'w': _uniform((cin, cout, k, k), bound), 'b': _uniform((cout,), bound)}


def _init_linear(din, dout):
    bound = 1.0 / math.sqrt(din)
    return (_uniform((din, dout), bound), _uniform((dout,), bound))


def _init_mlp(dims):
    return [_init_linear(dims[i], dims[i + 1]) for i in range(len(dims) - 1)]


def _init_swin(C, nH):
    ws = WINDOW_SIZE
    return {'norm1': (jnp.ones((C,), jnp.float32), jnp.zeros((C,), jnp.float32)),
            'qkv': _init_linear(C, 3 * C),
            'rpb': jax.random.normal(_next_key(), ((2 * ws - 1) ** 2, nH), jnp.float32) * 0.02,
            'proj': _init_linear(C, C),
            'norm2': (jnp.ones((C,), jnp.float32), jnp.zeros((C,), jnp.float32)),
            'fc1': _init_linear(C, 4 * C),
            'fc2': _init_linear(4 * C, C)}


def _init_entropy_bottleneck(C, filters=(3, 3, 3, 3), init_scale=10.0):
    f = (1,) + tuple(filters) + (1,)
    mats, biases, factors = [], [], []
    for i in range(len(f) - 1):
        init_v = math.log(math.expm1(1.0 / init_scale / f[i + 1]))
        mats.append(jnp.full((C, f[i + 1], f[i]), init_v, jnp.float32))
        biases.append(_uniform((C, f[i + 1], 1), 0.5))
        if i < len(f) - 2:
            factors.append(jnp.zeros((C, f[i + 1], 1), jnp.float32))
    q = jnp.tile(jnp.asarray([-init_scale, 0.0, init_scale], jnp.float32),
                 (C, 1)).reshape(C, 1, 3)
    return {'matrices': mats, 'biases': biases, 'factors': factors, 'quantiles': q}


def init_params(N, M):
    P = {}
    P['g_a0'] = _init_conv(3, N, 5)
    P['g_a1'] = [_init_swin(N, NUM_HEADS[0]) for _ in range(DEPTHS[0])]
    P['g_a2'] = _init_conv(N, N, 3)
    P['g_a3'] = [_init_swin(N, NUM_HEADS[1]) for _ in range(DEPTHS[1])]
    P['g_a4'] = _init_conv(N, N, 3)
    P['g_a5'] = [_init_swin(N, NUM_HEADS[2]) for _ in range(DEPTHS[2])]
    P['g_a6'] = _init_conv(N, M, 3)

    P['h_a0'] = _init_conv(M, N, 3)
    P['h_a1'] = _init_conv(N, N, 3)
    P['h_a2'] = _init_conv(N, N, 3)

    P['h_s0'] = _init_deconv(N, M, 3)
    P['h_s1'] = _init_deconv(M, M * 3 // 2, 3)
    P['h_s2'] = _init_conv(M * 3 // 2, M * 2, 3)

    P['g_s0'] = _init_deconv(M, N, 3)
    P['g_s1'] = [_init_swin(N, NUM_HEADS[2]) for _ in range(DEPTHS[2])]
    P['g_s2'] = _init_deconv(N, N, 3)
    P['g_s3'] = [_init_swin(N, NUM_HEADS[1]) for _ in range(DEPTHS[1])]
    P['g_s4'] = _init_deconv(N, N, 3)
    P['g_s5'] = [_init_swin(N, NUM_HEADS[0]) for _ in range(DEPTHS[0])]
    P['g_s6'] = _init_conv(N, 3 * 4, 3)                       # subpel_conv3x3(N, 3, 2)

    P['eb'] = _init_entropy_bottleneck(N)

    sc = M // 10
    P['ep_anchor'], P['ep_nonanchor'] = [], []
    P['lrp_anchor'], P['lrp_nonanchor'] = [], []
    P['acctx'], P['agctx'] = [None], [None]
    for i in range(10):
        in_ep = 2 * M if i == 0 else 2 * M + 3 * sc
        # TODO(synk): EntropyParameters / LRP / ACCTX / AGCTX internal architectures not
        # provided; standard 1x1-conv (per-pixel MLP) stacks with GELU are used instead.
        P['ep_anchor'].append(_init_mlp([in_ep, 8 * sc, 4 * sc, 2 * sc]))
        P['ep_nonanchor'].append(_init_mlp([in_ep, 8 * sc, 4 * sc, 2 * sc]))
        P['lrp_anchor'].append(_init_mlp([M + (i + 1) * sc, 4 * sc, 2 * sc, sc]))
        P['lrp_nonanchor'].append(_init_mlp([M + (i + 1) * sc, 4 * sc, 2 * sc, sc]))
        if i:
            P['acctx'].append(_init_mlp([sc * i, 4 * sc, 2 * sc]))
            P['agctx'].append(_init_mlp([sc * i, 2 * sc, sc]))
    return P


if __name__ == "__main__":
    params = init_params(N_CH, M_CH)
    key = jax.random.PRNGKey(0)
    x = jax.random.normal(key, (1, 3, 64, 64), jnp.float32)

    out = s2lic_forward(params, x)
    out = jax.block_until_ready(out)

    assert out['x_hat'].shape == (1, 3, 64, 64)
    assert out['likelihoods']['y_likelihoods'].shape == (1, M_CH, 4, 4)
    assert out['likelihoods']['z_likelihoods'].shape == (1, N_CH, 1, 1)
    assert bool(jnp.all(jnp.isfinite(out['x_hat'])))
    assert bool(jnp.all(out['likelihoods']['y_likelihoods'] >= LIKELIHOOD_MIN))
    print("KERNEL_OK")
</pallas_src>

<mosaic_0001>
module attributes {stable_mosaic.version = 11 : i64} {
  func.func @_matmul_kernel(%arg0: i32, %arg1: i32, %arg2: memref<256x75xbf16, #tpu.memory_space<vmem>>, %arg3: memref<75x128xbf16, #tpu.memory_space<vmem>>, %arg4: memref<1x128xf32, #tpu.memory_space<vmem>>, %arg5: memref<256x128xf32, #tpu.memory_space<vmem>>) attributes {dimension_semantics = [#tpu.dimension_semantics<parallel>, #tpu.dimension_semantics<parallel>], iteration_bounds = array<i64: 4, 1>, scalar_prefetch = 0 : i64, scratch_operands = 0 : i64, tpu.core_type = #tpu.core_type<tc>, window_params = [{transform_indices = @transform_0, window_bounds = array<i64: 256, 75>}, {transform_indices = @transform_1, window_bounds = array<i64: 75, 128>}, {transform_indices = @transform_2, window_bounds = array<i64: 1, 128>}, {transform_indices = @transform_3, window_bounds = array<i64: 256, 128>}]} {
    %c0 = arith.constant 0 : index
    %c0_0 = arith.constant 0 : index
    %0 = vector.load %arg2[%c0, %c0_0] : memref<256x75xbf16, #tpu.memory_space<vmem>>, vector<256x75xbf16>
    %c0_1 = arith.constant 0 : index
    %c0_2 = arith.constant 0 : index
    %1 = vector.load %arg3[%c0_1, %c0_2] : memref<75x128xbf16, #tpu.memory_space<vmem>>, vector<75x128xbf16>
    %cst = arith.constant dense<0.000000e+00> : vector<256x128xf32>
    %2 = tpu.matmul %0, %1, %cst {dimension_numbers = #tpu.dot_dimension_numbers<[1], [0], [0], [1], [0, 0, 1, 1], [], []>} : vector<256x75xbf16>, vector<75x128xbf16>, vector<256x128xf32> -> vector<256x128xf32>
    %c0_3 = arith.constant 0 : index
    %c0_4 = arith.constant 0 : index
    %3 = vector.load %arg4[%c0_3, %c0_4] : memref<1x128xf32, #tpu.memory_space<vmem>>, vector<1x128xf32>
    %4 = vector.broadcast %3 : vector<1x128xf32> to vector<256x128xf32>
    %5 = arith.addf %2, %4 : vector<256x128xf32>
    %c0_5 = arith.constant 0 : index
    %c0_6 = arith.constant 0 : index
    %6 = vector.load %arg5[%c0_5, %c0_6] : memref<256x128xf32, #tpu.memory_space<vmem>>, vector<256x128xf32>
    tpu.vector_store %arg5[%c0_5, %c0_6], %5 {strides = array<i32>} : memref<256x128xf32, #tpu.memory_space<vmem>>, vector<256x128xf32>,
    return
  }
  func.func @transform_0(%arg0: i32, %arg1: i32) -> (i32, i32) {
    %c0_i32 = arith.constant 0 : i32
    %c0_i32_0 = arith.constant 0 : i32
    return %arg0, %c0_i32 : i32, i32
  }
  func.func @transform_1(%arg0: i32, %arg1: i32) -> (i32, i32) {
    %c0_i32 = arith.constant 0 : i32
    %c0_i32_0 = arith.constant 0 : i32
    return %c0_i32, %arg1 : i32, i32
  }
  func.func @transform_2(%arg0: i32, %arg1: i32) -> (i32, i32) {
    %c0_i32 = arith.constant 0 : i32
    %c0_i32_0 = arith.constant 0 : i32
    return %c0_i32, %arg1 : i32, i32
  }
  func.func @transform_3(%arg0: i32, %arg1: i32) -> (i32, i32) {
    %c0_i32 = arith.constant 0 : i32
    return %arg0, %arg1 : i32, i32
  }
}

</mosaic_0001>

<llo_original>
// kernel: tpu_custom_call.1
$region0: #{tpu_custom_call.1}
  #allocation0 [shape = 'u32[]', space=smem, size = 0x4, offset = 0x4, fixed_abs, tag = 'smem constant byte address 0x4 - core index']
  #allocation1 [shape = 'u32[144,128]{1,0:T(1,128)}', space=vmem, size = 0x12000, scoped, tag = 'internal scratch']
  %s0 = inlined_call_operand.vmem [shape: bf16[1024,75], index: 0, kind: input, shape index: {}]
  %s1 = inlined_call_operand.vmem [shape: bf16[75,128], index: 1, kind: input, shape index: {}]
  %s2 = inlined_call_operand.vmem [shape: f32[1,128], index: 2, kind: input, shape index: {}]
  %s3 = inlined_call_operand.vmem [shape: f32[1024,32], index: 3, kind: output, shape index: {}]
  %s4 = sld [smem:[#allocation0]]
  $region45: #{tpu_custom_call.1} parent=0
    _
  %s6 = ssub.s32 1, %s4
  %s7 = scalar_select 0, %s6, %s4
  loop: start=0, step=1, limit=6
  $region2: #{tpu_custom_call.1} parent=0 // loop_pre_header
    _
  $region3: #{tpu_custom_call.1} parent=0 // loop_header
    %s9 = sphi 0, %s13
    %p10 = scmp.ge.s32.totalorder %s9, 6
    %s16 = sphi 0, %s28
    %s17 = sphi 0, %s24
    %s18 = sphi 0, %s16
    %s19 = sphi 0, %s17
    %s20 = sphi 0, %s18
    %s21 = sphi 0, %s19
    %s31 = sphi 0, %s33
    %s34 = sphi 0, %s31
    %s35 = sphi 0, %s34
    %s51 = sphi 0, %s35
    %s57 = sphi 0, %s59
    %s60 = sphi 0, %s57
    %s61 = sphi 0, %s60
    %s77 = sphi 0, %s61
    %s83 = sphi 0, %s85
    %s86 = sphi 0, %s83
    %s87 = sphi 0, %s86
    %s103 = sphi 0, %s87
    %s111 = sphi 0, %s113
    %s114 = sphi 0, %s111
    %s115 = sphi 0, %s114
    %s131 = sphi 0, %s115
  $region4: #{tpu_custom_call.1} parent=0 // loop_header_branch
    %12 = sbr.rel (%p10) target = $region8
  $region5: #{tpu_custom_call.1} parent=0 // loop_body
    %s14 = ssub.s32 %s9, 1
    %s15 = ssub.s32 %s9, 2
    %s22 = sadd.s32 1, %s17
    %p23 = scmp.ge.s32.totalorder %s22, 1
    %s24 = scalar_select %p23, 0, %s22
    %s25 = sadd.s32 1, %s16
    %s26 = scalar_select %p23, %s25, %s16
    %p27 = scmp.ge.s32.totalorder %s26, 4
    %s28 = scalar_select %p27, 0, %s26
    %s29 = ssub.s32 %s16, %s28
    %p30 = scmp.eq.s32.totalorder %s29, 0
    %s32 = sadd.s32 %s31, 1
    %s33 = scalar_select %p30, %s31, %s32
    %p36 = pneg %p30
    %p37 = scmp.eq.s32.totalorder %s9, 3
    %p38 = por %p36, %p37
    %p39 = scmp.ne.s32.totalorder %s31, %s34
    %p40 = scmp.eq.s32.totalorder %s9, 0
    %p41 = por %p39, %p40
    %p42 = scmp.ne.s32.totalorder %s31, %s34
    %p43 = scmp.eq.s32.totalorder %s14, 3
    %p44 = por %p42, %p43
    %p45 = scmp.ne.s32.totalorder %s34, %s35
    %p46 = scmp.eq.s32.totalorder %s14, 0
    %p47 = por %p45, %p46
    %p48 = scmp.ne.s32.totalorder %s34, %s35
    %p49 = scmp.eq.s32.totalorder %s15, 3
    %p50 = por %p48, %p49
    %p52 = scmp.ne.s32.totalorder %s35, %s51
    %p53 = scmp.eq.s32.totalorder %s15, 0
    %p54 = por %p52, %p53
    %s55 = ssub.s32 %s17, %s24
    %p56 = scmp.eq.s32.totalorder %s55, 0
    %s58 = sadd.s32 %s57, 1
    %s59 = scalar_select %p56, %s57, %s58
    %p62 = pneg %p56
    %p63 = scmp.eq.s32.totalorder %s9, 3
    %p64 = por %p62, %p63
    %p65 = scmp.ne.s32.totalorder %s57, %s60
    %p66 = scmp.eq.s32.totalorder %s9, 0
    %p67 = por %p65, %p66
    %p68 = scmp.ne.s32.totalorder %s57, %s60
    %p69 = scmp.eq.s32.totalorder %s14, 3
    %p70 = por %p68, %p69
    %p71 = scmp.ne.s32.totalorder %s60, %s61
    %p72 = scmp.eq.s32.totalorder %s14, 0
    %p73 = por %p71, %p72
    %p74 = scmp.ne.s32.totalorder %s60, %s61
    %p75 = scmp.eq.s32.totalorder %s15, 3
    %p76 = por %p74, %p75
    %p78 = scmp.ne.s32.totalorder %s61, %s77
    %p79 = scmp.eq.s32.totalorder %s15, 0
    %p80 = por %p78, %p79
    %s81 = ssub.s32 %s17, %s24
    %p82 = scmp.eq.s32.totalorder %s81, 0
    %s84 = sadd.s32 %s83, 1
    %s85 = scalar_select %p82, %s83, %s84
    %p88 = pneg %p82
    %p89 = scmp.eq.s32.totalorder %s9, 3
    %p90 = por %p88, %p89
    %p91 = scmp.ne.s32.totalorder %s83, %s86
    %p92 = scmp.eq.s32.totalorder %s9, 0
    %p93 = por %p91, %p92
    %p94 = scmp.ne.s32.totalorder %s83, %s86
    %p95 = scmp.eq.s32.totalorder %s14, 3
    %p96 = por %p94, %p95
    %p97 = scmp.ne.s32.totalorder %s86, %s87
    %p98 = scmp.eq.s32.totalorder %s14, 0
    %p99 = por %p97, %p98
    %p100 = scmp.ne.s32.totalorder %s86, %s87
    %p101 = scmp.eq.s32.totalorder %s15, 3
    %p102 = por %p100, %p101
    %p104 = scmp.ne.s32.totalorder %s87, %s103
    %p105 = scmp.eq.s32.totalorder %s15, 0
    %p106 = por %p104, %p105
    %s107 = ssub.s32 %s16, %s28
    %s108 = ssub.s32 %s17, %s24
    %s109 = sor.u32 %s107, %s108
    %p110 = scmp.eq.s32.totalorder %s109, 0
    %s112 = sadd.s32 %s111, 1
    %s113 = scalar_select %p110, %s111, %s112
    %p116 = pneg %p110
    %p117 = scmp.eq.s32.totalorder %s9, 3
    %p118 = por %p116, %p117
    %p119 = scmp.ne.s32.totalorder %s111, %s114
    %p120 = scmp.eq.s32.totalorder %s9, 0
    %p121 = por %p119, %p120
    %p122 = scmp.ne.s32.totalorder %s111, %s114
    %p123 = scmp.eq.s32.totalorder %s14, 3
    %p124 = por %p122, %p123
    %p125 = scmp.ne.s32.totalorder %s114, %s115
    %p126 = scmp.eq.s32.totalorder %s14, 0
    %p127 = por %p125, %p126
    %p128 = scmp.ne.s32.totalorder %s114, %s115
    %p129 = scmp.eq.s32.totalorder %s15, 3
    %p130 = por %p128, %p129
    %p132 = scmp.ne.s32.totalorder %s115, %s131
    %p133 = scmp.eq.s32.totalorder %s15, 0
    %p134 = por %p132, %p133
    %p135 = scmp.le.s32.totalorder 1, %s9
    %p136 = scmp.lt.s32.totalorder %s9, 5
    %p137 = pnand %p135, %p136
    %p138 = pneg %p137
    // Predicated region
    $region9: #{tpu_custom_call.1} parent=5 // pred_check
      _
    $region10: #{tpu_custom_call.1} parent=5 // pred_check_branch
      %140 = sbr.rel (%p137) target = $region12
    $region11: #{tpu_custom_call.1} parent=5 // pred_region
      %s141 = ssub.s32 %s9, 1
      // Predicated region
      $region13: #{tpu_custom_call.1} parent=11 // pred_check
        %p142 = pneg %p73
      $region14: #{tpu_custom_call.1} parent=11 // pred_check_branch
        %144 = sbr.rel (%p142) target = $region16
      $region15: #{tpu_custom_call.1} parent=11 // pred_region
        %p145 = scmp.lt.s32.totalorder %s19, 0
        %s146 = scalar_select %p145, %s19, 0
        %s147 = smul.addr %s146, 4
        %s148 = scalar_lea.vmem %s1, %s147
      $region16: #{tpu_custom_call.1} parent=11 // pred_fallthru
        _
      // Predicated region
      $region17: #{tpu_custom_call.1} parent=11 // pred_check
        %p149 = pneg %p99
      $region18: #{tpu_custom_call.1} parent=11 // pred_check_branch
        %151 = sbr.rel (%p149) target = $region20
      $region19: #{tpu_custom_call.1} parent=11 // pred_region
        %p152 = scmp.lt.s32.totalorder %s19, 0
        %s153 = scalar_select %p152, %s19, 0
        %s154 = scalar_lea.vmem %s2, %s153
      $region20: #{tpu_custom_call.1} parent=11 // pred_fallthru
        _
    $region12: #{tpu_custom_call.1} parent=5 // pred_fallthru
      _
    %p155 = scmp.lt.s32.totalorder %s9, 4
    // Predicated region
    $region21: #{tpu_custom_call.1} parent=5 // pred_check
      %p156 = pneg %p155
    $region22: #{tpu_custom_call.1} parent=5 // pred_check_branch
      %158 = sbr.rel (%p156) target = $region24
    $region23: #{tpu_custom_call.1} parent=5 // pred_region
      // Predicated region
      $region25: #{tpu_custom_call.1} parent=23 // pred_check
        %p159 = pneg %p41
      $region26: #{tpu_custom_call.1} parent=23 // pred_check_branch
        %161 = sbr.rel (%p159) target = $region28
      $region27: #{tpu_custom_call.1} parent=23 // pred_region
        %s162 = smul.u32 32, %s16
        %p163 = scmp.lt.s32.totalorder %s162, 127
        %s164 = scalar_select %p163, %s162, 127
        %s165 = smul.addr %s164, 4
        %s166 = scalar_lea.vmem %s0, %s165
        %s167 = smul.u32 32, %s16
      $region28: #{tpu_custom_call.1} parent=23 // pred_fallthru
        _
    $region24: #{tpu_custom_call.1} parent=5 // pred_fallthru
      _
    %p168 = scmp.le.s32.totalorder 1, %s9
    %p169 = scmp.lt.s32.totalorder %s9, 5
    %p170 = pnand %p168, %p169
    %p171 = pneg %p170
    // Predicated region
    $region29: #{tpu_custom_call.1} parent=5 // pred_check
      _
    $region30: #{tpu_custom_call.1} parent=5 // pred_check_branch
      %173 = sbr.rel (%p170) target = $region32
    $region31: #{tpu_custom_call.1} parent=5 // pred_region
      %s174 = ssub.s32 %s9, 1
      %s175 = smul.u32 32, %s18
      %p176 = scmp.lt.s32.totalorder %s175, 127
      %s177 = scalar_select %p176, %s175, 127
      %s178 = smul.addr %s177, 4
      %s179 = scalar_lea.vmem %s0, %s178
      %p180 = pneg %p47
      %p181 = pneg %p44
      %p182 = scmp.lt.s32.totalorder %s19, 0
      %s183 = scalar_select %p182, %s19, 0
      %s184 = smul.addr %s183, 4
      %s185 = scalar_lea.vmem %s1, %s184
      %p186 = pneg %p73
      %p187 = pneg %p70
      %p188 = scmp.lt.s32.totalorder %s19, 0
      %s189 = scalar_select %p188, %s19, 0
      %s190 = scalar_lea.vmem %s2, %s189
      %p191 = pneg %p99
      %p192 = pneg %p96
      %p193 = pneg %p127
      %p194 = pneg %p124
      %s195 = smul.u32 32, %s18
      %p196 = scmp.lt.s32.totalorder %s195, 127
      %s197 = scalar_select %p196, %s195, 127
      %p198 = scmp.lt.s32.totalorder %s19, 0
      %s199 = scalar_select %p198, %s19, 0
      %s200 = sadd.s32 %s199, %s197
      %s201 = smul.addr %s200, 8
      %s202 = scalar_lea.vmem %s3, %s201
      %s203 = smul.u32 32, %s18
      %p204 = scmp.lt.s32.totalorder %s203, 127
      %s205 = scalar_select %p204, %s203, 127
      %s206 = smul.addr %s205, 4
      %s207 = scalar_lea.vmem %s0, %s206
      %s208 = smul.u32 32, %s18
      %p209 = scmp.lt.s32.totalorder %s19, 0
      %s210 = scalar_select %p209, %s19, 0
      %s211 = smul.addr %s210, 4
      %s212 = scalar_lea.vmem %s1, %s211
      %p213 = scmp.lt.s32.totalorder %s19, 0
      %s214 = scalar_select %p213, %s19, 0
      %s215 = scalar_lea.vmem %s2, %s214
      %s216 = smul.u32 32, %s18
      %p217 = scmp.lt.s32.totalorder %s216, 127
      %s218 = scalar_select %p217, %s216, 127
      %p219 = scmp.lt.s32.totalorder %s19, 0
      %s220 = scalar_select %p219, %s19, 0
      %s221 = sadd.s32 %s220, %s218
      %s222 = smul.addr %s221, 8
      %s223 = scalar_lea.vmem %s3, %s222
      %s224 = smul.u32 32, %s18
      %v226 = vld [vmem:[%s207] sm:$0xf]
      %v227 = vld [vmem:[%s207 + $0x4] sm:$0xf]
      %v228 = vld [vmem:[%s207 + $0x8] sm:$0xf]
      %v229 = vld [vmem:[%s207 + $0xc] sm:$0xf]
      %v230 = vld [vmem:[%s207 + $0x10] sm:$0xf]
      %v231 = vld [vmem:[%s207 + $0x14] sm:$0xf]
      %v232 = vld [vmem:[%s207 + $0x18] sm:$0xf]
      %v233 = vld [vmem:[%s207 + $0x1c] sm:$0xf]
      %v234 = vld [vmem:[%s207 + $0x20] sm:$0xf]
      %v235 = vld [vmem:[%s207 + $0x24] sm:$0xf]
      %v236 = vld [vmem:[%s207 + $0x28] sm:$0xf]
      %v237 = vld [vmem:[%s207 + $0x2c] sm:$0xf]
      %v238 = vld [vmem:[%s207 + $0x30] sm:$0xf]
      %v239 = vld [vmem:[%s207 + $0x34] sm:$0xf]
      %v240 = vld [vmem:[%s207 + $0x38] sm:$0xf]
      %v241 = vld [vmem:[%s207 + $0x3c] sm:$0xf]
      %v242 = vld [vmem:[%s207 + $0x40] sm:$0xf]
      %v243 = vld [vmem:[%s207 + $0x44] sm:$0xf]
      %v244 = vld [vmem:[%s207 + $0x48] sm:$0xf]
      %v245 = vld [vmem:[%s207 + $0x4c] sm:$0xf]
      %v246 = vld [vmem:[%s207 + $0x50] sm:$0xf]
      %v247 = vld [vmem:[%s207 + $0x54] sm:$0xf]
      %v248 = vld [vmem:[%s207 + $0x58] sm:$0xf]
      %v249 = vld [vmem:[%s207 + $0x5c] sm:$0xf]
      %v250 = vld [vmem:[%s207 + $0x60] sm:$0xf]
      %v251 = vld [vmem:[%s207 + $0x64] sm:$0xf]
      %v252 = vld [vmem:[%s207 + $0x68] sm:$0xf]
      %v253 = vld [vmem:[%s207 + $0x6c] sm:$0xf]
      %v254 = vld [vmem:[%s207 + $0x70] sm:$0xf]
      %v255 = vld [vmem:[%s207 + $0x74] sm:$0xf]
      %v256 = vld [vmem:[%s207 + $0x78] sm:$0xf]
      %v257 = vld [vmem:[%s207 + $0x7c] sm:$0xf]
      %v258 = vld [vmem:[%s212] sm:$0xf]
      %v259 = vld [vmem:[%s212 + $0x4] sm:$0xf]
      %v260 = vld [vmem:[%s212 + $0x8] sm:$0xf]
      %v261 = vld [vmem:[%s212 + $0xc] sm:$0xf]
      %v262 = vld [vmem:[%s212 + $0x10] sm:$0xf]
      %v263 = vld [vmem:[%s212 + $0x14] sm:$0xf]
      %v264 = vld [vmem:[%s212 + $0x18] sm:$0xf]
      %v265 = vld [vmem:[%s212 + $0x1c] sm:$0xf]
      %v266 = vld [vmem:[%s212 + $0x20] sm:$0xf]
      %v267 = vld [vmem:[%s212 + $0x24] sm:$0x3]
      %v268 = vld [vmem:[%s215] sm:$0x1]
      %v270 = vlaneseq
      %v271 = vshrl.u32 %v270, 7
      %v272 = vsub.s32 0, %v271
      %v273 = vrot.slane %v268, %v272
      %v307 = vunpack.c.l.b16 %v226
      %v308 = vunpack.c.l.b16 %v227
      %v309 = vunpack.c.l.b16 %v228
      %v310 = vunpack.c.l.b16 %v229
      %v311 = vunpack.c.l.b16 %v230
      %v312 = vunpack.c.l.b16 %v231
      %v313 = vunpack.c.l.b16 %v232
      %v314 = vunpack.c.l.b16 %v233
      %v315 = vunpack.c.l.b16 %v234
      %v316 = vunpack.c.l.b16 %v235
      %v317 = vunpack.c.l.b16 %v236
      %v318 = vunpack.c.l.b16 %v237
      %v319 = vunpack.c.l.b16 %v238
      %v320 = vunpack.c.l.b16 %v239
      %v321 = vunpack.c.l.b16 %v240
      %v322 = vunpack.c.l.b16 %v241
      %v323 = vunpack.c.l.b16 %v242
      %v324 = vunpack.c.l.b16 %v243
      %v325 = vunpack.c.l.b16 %v244
      %v326 = vunpack.c.l.b16 %v245
      %v327 = vunpack.c.l.b16 %v246
      %v328 = vunpack.c.l.b16 %v247
      %v329 = vunpack.c.l.b16 %v248
      %v330 = vunpack.c.l.b16 %v249
      %v331 = vunpack.c.l.b16 %v250
      %v332 = vunpack.c.l.b16 %v251
      %v333 = vunpack.c.l.b16 %v252
      %v334 = vunpack.c.l.b16 %v253
      %v335 = vunpack.c.l.b16 %v254
      %v336 = vunpack.c.l.b16 %v255
      %v337 = vunpack.c.l.b16 %v256
      %v338 = vunpack.c.l.b16 %v257
      %v339 = vpack.c.b16 %v308, %v307
      %v340 = vpack.c.b16 %v310, %v309
      %v341 = vpack.c.b16 %v312, %v311
      %v342 = vpack.c.b16 %v314, %v313
      %v343 = vpack.c.b16 %v316, %v315
      %v344 = vpack.c.b16 %v318, %v317
      %v345 = vpack.c.b16 %v320, %v319
      %v346 = vpack.c.b16 %v322, %v321
      %v347 = vpack.c.b16 %v324, %v323
      %v348 = vpack.c.b16 %v326, %v325
      %v349 = vpack.c.b16 %v328, %v327
      %v350 = vpack.c.b16 %v330, %v329
      %v351 = vpack.c.b16 %v332, %v331
      %v352 = vpack.c.b16 %v334, %v333
      %v353 = vpack.c.b16 %v336, %v335
      %v354 = vpack.c.b16 %v338, %v337
      %v365 = vunpack.c.l.b16 %v258
      %v366 = vunpack.c.l.b16 %v259
      %v367 = vunpack.c.l.b16 %v260
      %v368 = vunpack.c.l.b16 %v261
      %v369 = vunpack.c.l.b16 %v262
      %v370 = vunpack.c.l.b16 %v263
      %v371 = vunpack.c.l.b16 %v264
      %v372 = vunpack.c.l.b16 %v265
      %v373 = vunpack.c.l.b16 %v266
      %v374 = vunpack.c.l.b16 %v267
      %v375 = vpack.c.b16 %v366, %v365
      %v376 = vpack.c.b16 %v368, %v367
      %v377 = vpack.c.b16 %v370, %v369
      %v378 = vpack.c.b16 %v372, %v371
      %v379 = vpack.c.b16 %v374, %v373
      %vm384 = vcmask 613376
      %v386 = vsel %vm384, %v339, 0
      %v389 = vsel %vm384, %v340, 0
      %v392 = vsel %vm384, %v341, 0
      %v395 = vsel %vm384, %v342, 0
      %v398 = vsel %vm384, %v343, 0
      %v401 = vsel %vm384, %v344, 0
      %v404 = vsel %vm384, %v345, 0
      %v407 = vsel %vm384, %v346, 0
      %v410 = vsel %vm384, %v347, 0
      %v413 = vsel %vm384, %v348, 0
      %v416 = vsel %vm384, %v349, 0
      %v419 = vsel %vm384, %v350, 0
      %v422 = vsel %vm384, %v351, 0
      %v425 = vsel %vm384, %v352, 0
      %v428 = vsel %vm384, %v353, 0
      %v431 = vsel %vm384, %v354, 0
      %vm433 = vcmask 1044480
      %vm434 = vcmask 1045504
      %v435 = vsel %vm433, 4294967295, 65535
      %v436 = vsel %vm434, %v435, 0
      %v438 = vand.u32 %v379, %v436
      %440 = vmatprep.subr.bf16.mxu0 0
      %441 = vmatpush1.bf16.msra.mxu0 %v375
      %442 = vmatprep.subr.bf16.mxu0 0
      %443 = vmatpush1.bf16.msra.mxu0 %v376
      %444 = vmatprep.subr.bf16.mxu0 0
      %445 = vmatpush1.bf16.msra.mxu0 %v377
      %446 = vmatprep.subr.bf16.mxu0 0
      %447 = vmatpush1.bf16.msra.mxu0 %v378
      %448 = vmatprep.subr.bf16.mxu0 0
      %449 = vmatpush1.bf16.msra.mxu0 %v438
      %450 = vmatprep.subr.bf16.mxu0 0
      %451 = vmatpush1.bf16.msra.mxu0 0
      %452 = vmatprep.subr.bf16.mxu0 0
      %453 = vmatpush1.bf16.msra.mxu0 0
      %454 = vmatprep.subr.bf16.mxu0 0
      %455 = vmatpush1.bf16.msra.mxu0 0
      %456 = vmatprep.subr.bf16.mxu0 0
      %457 = vmatpush1.bf16.msra.mxu0 0
      %458 = vmatprep.subr.bf16.mxu0 0
      %459 = vmatpush1.bf16.msra.mxu0 0
      %460 = vmatprep.subr.bf16.mxu0 0
      %461 = vmatpush1.bf16.msra.mxu0 0
      %462 = vmatprep.subr.bf16.mxu0 0
      %463 = vmatpush1.bf16.msra.mxu0 0
      %464 = vmatprep.subr.bf16.mxu0 0
      %465 = vmatpush1.bf16.msra.mxu0 0
      %466 = vmatprep.subr.bf16.mxu0 0
      %467 = vmatpush1.bf16.msra.mxu0 0
      %468 = vmatprep.subr.bf16.mxu0 0
      %469 = vmatpush1.bf16.msra.mxu0 0
      %470 = vmatprep.subr.bf16.mxu0 0
      %471 = vmatpush1.bf16.msra.mxu0 0
      %472 = vmatprep.mubr.bf16.mxu0 0
      %473 = vmatmul.mubr.bf16.gmra.mrb[0].mxu0 %v386
      %v474 = vpop.f32.mrb[0].mxu0
      %v475 = vadd.f32 %v273, %v474
      %v476 = vpop.f32.mrb[0].mxu0
      %v477 = vpop.f32.mrb[0].mxu0
      %v478 = vadd.f32 %v273, %v477
      %v479 = vpop.f32.mrb[0].mxu0
      %480 = vmatprep.mubr.bf16.mxu0 0
      %481 = vmatmul.mubr.bf16.gmra.mrb[0].mxu0 %v389
      %v482 = vpop.f32.mrb[0].mxu0
      %v483 = vadd.f32 %v273, %v482
      %v484 = vpop.f32.mrb[0].mxu0
      %v485 = vpop.f32.mrb[0].mxu0
      %v486 = vadd.f32 %v273, %v485
      %v487 = vpop.f32.mrb[0].mxu0
      %488 = vmatprep.mubr.bf16.mxu0 0
      %489 = vmatmul.mubr.bf16.gmra.mrb[0].mxu0 %v392
      %v490 = vpop.f32.mrb[0].mxu0
      %v491 = vadd.f32 %v273, %v490
      %v492 = vpop.f32.mrb[0].mxu0
      %v493 = vpop.f32.mrb[0].mxu0
      %v494 = vadd.f32 %v273, %v493
      %v495 = vpop.f32.mrb[0].mxu0
      %496 = vmatprep.mubr.bf16.mxu0 0
      %497 = vmatmul.mubr.bf16.gmra.mrb[0].mxu0 %v395
      %v498 = vpop.f32.mrb[0].mxu0
      %v499 = vadd.f32 %v273, %v498
      %v500 = vpop.f32.mrb[0].mxu0
      %v501 = vpop.f32.mrb[0].mxu0
      %v502 = vadd.f32 %v273, %v501
      %v503 = vpop.f32.mrb[0].mxu0
      %504 = vmatprep.mubr.bf16.mxu0 0
      %505 = vmatmul.mubr.bf16.gmra.mrb[0].mxu0 %v398
      %v506 = vpop.f32.mrb[0].mxu0
      %v507 = vadd.f32 %v273, %v506
      %v508 = vpop.f32.mrb[0].mxu0
      %v509 = vpop.f32.mrb[0].mxu0
      %v510 = vadd.f32 %v273, %v509
      %v511 = vpop.f32.mrb[0].mxu0
      %512 = vmatprep.mubr.bf16.mxu0 0
      %513 = vmatmul.mubr.bf16.gmra.mrb[0].mxu0 %v401
      %v514 = vpop.f32.mrb[0].mxu0
      %v515 = vadd.f32 %v273, %v514
      %v516 = vpop.f32.mrb[0].mxu0
      %v517 = vpop.f32.mrb[0].mxu0
      %v518 = vadd.f32 %v273, %v517
      %v519 = vpop.f32.mrb[0].mxu0
      %520 = vmatprep.mubr.bf16.mxu0 0
      %521 = vmatmul.mubr.bf16.gmra.mrb[0].mxu0 %v404
      %v522 = vpop.f32.mrb[0].mxu0
      %v523 = vadd.f32 %v273, %v522
      %v524 = vpop.f32.mrb[0].mxu0
      %v525 = vpop.f32.mrb[0].mxu0
      %v526 = vadd.f32 %v273, %v525
      %v527 = vpop.f32.mrb[0].mxu0
      %528 = vmatprep.mubr.bf16.mxu0 0
      %529 = vmatmul.mubr.bf16.gmra.mrb[0].mxu0 %v407
      %v530 = vpop.f32.mrb[0].mxu0
      %v531 = vadd.f32 %v273, %v530
      %v532 = vpop.f32.mrb[0].mxu0
      %v533 = vpop.f32.mrb[0].mxu0
      %v534 = vadd.f32 %v273, %v533
      %v535 = vpop.f32.mrb[0].mxu0
      %536 = vmatprep.mubr.bf16.mxu0 0
      %537 = vmatmul.mubr.bf16.gmra.mrb[0].mxu0 %v410
      %v538 = vpop.f32.mrb[0].mxu0
      %v539 = vadd.f32 %v273, %v538
      %v540 = vpop.f32.mrb[0].mxu0
      %v541 = vpop.f32.mrb[0].mxu0
      %v542 = vadd.f32 %v273, %v541
      %v543 = vpop.f32.mrb[0].mxu0
      %544 = vmatprep.mubr.bf16.mxu0 0
      %545 = vmatmul.mubr.bf16.gmra.mrb[0].mxu0 %v413
      %v546 = vpop.f32.mrb[0].mxu0
      %v547 = vadd.f32 %v273, %v546
      %v548 = vpop.f32.mrb[0].mxu0
      %v549 = vpop.f32.mrb[0].mxu0
      %v550 = vadd.f32 %v273, %v549
      %v551 = vpop.f32.mrb[0].mxu0
      %552 = vmatprep.mubr.bf16.mxu0 0
      %553 = vmatmul.mubr.bf16.gmra.mrb[0].mxu0 %v416
      %v554 = vpop.f32.mrb[0].mxu0
      %v555 = vadd.f32 %v273, %v554
      %v556 = vpop.f32.mrb[0].mxu0
      %v557 = vpop.f32.mrb[0].mxu0
      %v558 = vadd.f32 %v273, %v557
      %v559 = vpop.f32.mrb[0].mxu0
      %560 = vmatprep.mubr.bf16.mxu0 0
      %561 = vmatmul.mubr.bf16.gmra.mrb[0].mxu0 %v419
      %v562 = vpop.f32.mrb[0].mxu0
      %v563 = vadd.f32 %v273, %v562
      %v564 = vpop.f32.mrb[0].mxu0
      %v565 = vpop.f32.mrb[0].mxu0
      %v566 = vadd.f32 %v273, %v565
      %v567 = vpop.f32.mrb[0].mxu0
      %568 = vmatprep.mubr.bf16.mxu0 0
      %569 = vmatmul.mubr.bf16.gmra.mrb[0].mxu0 %v422
      %v570 = vpop.f32.mrb[0].mxu0
      %v571 = vadd.f32 %v273, %v570
      %v572 = vpop.f32.mrb[0].mxu0
      %v573 = vpop.f32.mrb[0].mxu0
      %v574 = vadd.f32 %v273, %v573
      %v575 = vpop.f32.mrb[0].mxu0
      %576 = vmatprep.mubr.bf16.mxu0 0
      %577 = vmatmul.mubr.bf16.gmra.mrb[0].mxu0 %v425
      %v578 = vpop.f32.mrb[0].mxu0
      %v579 = vadd.f32 %v273, %v578
      %v580 = vpop.f32.mrb[0].mxu0
      %v581 = vpop.f32.mrb[0].mxu0
      %v582 = vadd.f32 %v273, %v581
      %v583 = vpop.f32.mrb[0].mxu0
      %584 = vmatprep.mubr.bf16.mxu0 0
      %585 = vmatmul.mubr.bf16.gmra.mrb[0].mxu0 %v428
      %v586 = vpop.f32.mrb[0].mxu0
      %v587 = vadd.f32 %v273, %v586
      %v588 = vpop.f32.mrb[0].mxu0
      %v589 = vpop.f32.mrb[0].mxu0
      %v590 = vadd.f32 %v273, %v589
      %v591 = vpop.f32.mrb[0].mxu0
      %592 = vmatprep.mubr.bf16.mxu0 0
      %593 = vmatmul.mubr.bf16.gmra.mrb[0].mxu0 %v431
      %v594 = vpop.f32.mrb[0].mxu0
      %v595 = vadd.f32 %v273, %v594
      %v596 = vpop.f32.mrb[0].mxu0
      %v597 = vpop.f32.mrb[0].mxu0
      %v598 = vadd.f32 %v273, %v597
      %v599 = vpop.f32.mrb[0].mxu0
      %600 = vdwg.mxu0
      %601 = vst [vmem:[%s223] sm:$0xff] %v475
      %602 = vst [vmem:[%s223 + $0x8] sm:$0xff] %v478
      %603 = vst [vmem:[%s223 + $0x10] sm:$0xff] %v483
      %604 = vst [vmem:[%s223 + $0x18] sm:$0xff] %v486
      %605 = vst [vmem:[%s223 + $0x20] sm:$0xff] %v491
      %606 = vst [vmem:[%s223 + $0x28] sm:$0xff] %v494
      %607 = vst [vmem:[%s223 + $0x30] sm:$0xff] %v499
      %608 = vst [vmem:[%s223 + $0x38] sm:$0xff] %v502
      %609 = vst [vmem:[%s223 + $0x40] sm:$0xff] %v507
      %610 = vst [vmem:[%s223 + $0x48] sm:$0xff] %v510
      %611 = vst [vmem:[%s223 + $0x50] sm:$0xff] %v515
      %612 = vst [vmem:[%s223 + $0x58] sm:$0xff] %v518
      %613 = vst [vmem:[%s223 + $0x60] sm:$0xff] %v523
      %614 = vst [vmem:[%s223 + $0x68] sm:$0xff] %v526
      %615 = vst [vmem:[%s223 + $0x70] sm:$0xff] %v531
      %616 = vst [vmem:[%s223 + $0x78] sm:$0xff] %v534
      %617 = vst [vmem:[%s223 + $0x80] sm:$0xff] %v539
      %618 = vst [vmem:[%s223 + $0x88] sm:$0xff] %v542
      %619 = vst [vmem:[%s223 + $0x90] sm:$0xff] %v547
      %620 = vst [vmem:[%s223 + $0x98] sm:$0xff] %v550
      %621 = vst [vmem:[%s223 + $0xa0] sm:$0xff] %v555
      %622 = vst [vmem:[%s223 + $0xa8] sm:$0xff] %v558
      %623 = vst [vmem:[%s223 + $0xb0] sm:$0xff] %v563
      %624 = vst [vmem:[%s223 + $0xb8] sm:$0xff] %v566
      %625 = vst [vmem:[%s223 + $0xc0] sm:$0xff] %v571
      %626 = vst [vmem:[%s223 + $0xc8] sm:$0xff] %v574
      %627 = vst [vmem:[%s223 + $0xd0] sm:$0xff] %v579
      %628 = vst [vmem:[%s223 + $0xd8] sm:$0xff] %v582
      %629 = vst [vmem:[%s223 + $0xe0] sm:$0xff] %v587
      %630 = vst [vmem:[%s223 + $0xe8] sm:$0xff] %v590
      %631 = vst [vmem:[%s223 + $0xf0] sm:$0xff] %v595
      %632 = vst [vmem:[%s223 + $0xf8] sm:$0xff] %v598
      %s633 = smul.u32 32, %s18
      %p634 = scmp.lt.s32.totalorder %s633, 127
      %s635 = scalar_select %p634, %s633, 127
      %p636 = scmp.lt.s32.totalorder %s19, 0
      %s637 = scalar_select %p636, %s19, 0
      %s638 = sadd.s32 %s637, %s635
      %s639 = smul.addr %s638, 8
      %s640 = scalar_lea.vmem %s3, %s639
      // Predicated region
      $region33: #{tpu_custom_call.1} parent=31 // pred_check
        %p641 = pneg %p124
      $region34: #{tpu_custom_call.1} parent=31 // pred_check_branch
        %643 = sbr.rel (%p641) target = $region36
      $region35: #{tpu_custom_call.1} parent=31 // pred_region
        %s644 = smul.u32 32, %s18
      $region36: #{tpu_custom_call.1} parent=31 // pred_fallthru
        _
    $region32: #{tpu_custom_call.1} parent=5 // pred_fallthru
      _
    %p645 = scmp.le.s32.totalorder 2, %s9
    // Predicated region
    $region37: #{tpu_custom_call.1} parent=5 // pred_check
      %p646 = pneg %p645
    $region38: #{tpu_custom_call.1} parent=5 // pred_check_branch
      %648 = sbr.rel (%p646) target = $region40
    $region39: #{tpu_custom_call.1} parent=5 // pred_region
      %s649 = ssub.s32 %s9, 2
      // Predicated region
      $region41: #{tpu_custom_call.1} parent=39 // pred_check
        %p650 = pneg %p130
      $region42: #{tpu_custom_call.1} parent=39 // pred_check_branch
        %652 = sbr.rel (%p650) target = $region44
      $region43: #{tpu_custom_call.1} parent=39 // pred_region
        %s653 = smul.u32 32, %s20
        %p654 = scmp.lt.s32.totalorder %s653, 127
        %s655 = scalar_select %p654, %s653, 127
        %p656 = scmp.lt.s32.totalorder %s21, 0
        %s657 = scalar_select %p656, %s21, 0
        %s658 = sadd.s32 %s657, %s655
        %s659 = smul.addr %s658, 8
        %s660 = scalar_lea.vmem %s3, %s659
      $region44: #{tpu_custom_call.1} parent=39 // pred_fallthru
        _
    $region40: #{tpu_custom_call.1} parent=5 // pred_fallthru
      _
  $region6: #{tpu_custom_call.1} parent=0 // loop_footer
    %s13 = sadd.s32 1, %s9
  $region7: #{tpu_custom_call.1} parent=0 // loop_footer_branch
    %8 = sbr.rel target = $region3
  $region8: #{tpu_custom_call.1} parent=0 // loop_exit
    _

</llo_original>
